<compile_context>
chip_gen: v7x
topology: tpu7x:2x2x1
jax: 0.10.0
libtpu: 0.0.40
codegen_flags: <defaults>
</compile_context>

<pallas_src>
import functools

import jax
import jax.numpy as jnp
from jax.experimental import pallas as pl
from jax.experimental.pallas import tpu as pltpu


def _mlp_silu_kernel(emb_ref, w_ref, b_ref, out_ref):
    # emb_ref: (B_pad, dim)   activation (f32 or bf16), identical every tile
    # w_ref:   (dim, tn)      N tile of the transposed Linear weight
    # b_ref:   (1, tn)        f32 bias tile
    # out_ref: (B_pad, tn)    f32
    z = (
        jnp.dot(emb_ref[...], w_ref[...], preferred_element_type=jnp.float32)
        + b_ref[...]
    )
    # SiLU(z) = z * sigmoid(z), kept in f32.
    out_ref[...] = z * jax.nn.sigmoid(z)


def _round_up(x, m):
    return ((x + m - 1) // m) * m


def _pick_tile_n(cond_dim_pad, max_tile=1024):
    """Largest lane-aligned (multiple-of-128) N tile dividing cond_dim_pad,
    capped at max_tile and chosen so grid_n >= 2 whenever possible (lets the
    'parallel' N axis feed both of v7x's TensorCores)."""
    assert cond_dim_pad % 128 == 0
    if cond_dim_pad <= 128:
        return cond_dim_pad
    cap = min(max_tile, cond_dim_pad // 2)
    cap -= cap % 128
    for tn in range(cap, 127, -128):
        if cond_dim_pad % tn == 0:
            return tn
    return 128  # cond_dim_pad is a multiple of 128, so 128 always divides


@functools.partial(jax.jit, static_argnames=("dim", "weight_dtype"))
def conditioner_timestep(timestep, weight_t, bias, *, dim,
                         weight_dtype=jnp.float32):
    """Pallas implementation of ConditionerTimestep.forward.

    Args:
      timestep:     (B,) array (any real dtype), the diffusion timesteps.
      weight_t:     (dim, cond_dim) float32 — transpose of the Linear weight.
      bias:         (cond_dim,)     float32.
      dim:          embedding dim (must be even); cond_dim = 4*dim.
      weight_dtype: DMA/MXU-input dtype for emb & weight (f32 or bf16).
    Returns:
      (B, cond_dim) float32.
    """
    assert dim % 2 == 0, "odd dim (zero padding lane) not implemented"
    cond_dim = 4 * dim
    B = timestep.shape[0]

    # --- sincos embedding, hoisted out of the kernel (computed exactly once) ---
    t = timestep.astype(jnp.float32).reshape(B, 1)
    omega = 1.0 / (10000.0 ** (jnp.arange(0, dim, 2, dtype=jnp.float32) / dim))
    ang = t * omega[None, :]                                      # (B, dim//2)
    emb = jnp.concatenate([jnp.sin(ang), jnp.cos(ang)], axis=-1)  # (B, dim)

    # --- pad to sublane/lane-aligned shapes (unmasked stores, TC-splittable N) ---
    B_pad = _round_up(B, 8)
    cond_dim_pad = _round_up(cond_dim, 128)

    emb = jnp.pad(emb, ((0, B_pad - B), (0, 0))).astype(weight_dtype)
    w = jnp.pad(weight_t.astype(weight_dtype),
                ((0, 0), (0, cond_dim_pad - cond_dim)))
    b2d = jnp.pad(bias.astype(jnp.float32),
                  (0, cond_dim_pad - cond_dim)).reshape(1, cond_dim_pad)

    tn = _pick_tile_n(cond_dim_pad)
    grid_n = cond_dim_pad // tn

    w_bytes = jnp.dtype(weight_dtype).itemsize
    # Double-buffered per-step VMEM footprint (emb + weight tile + bias + out).
    vmem_needed = 2 * ((B_pad * dim + dim * tn) * w_bytes
                       + (tn + B_pad * tn) * 4)
    vmem_limit = None
    if vmem_needed > 16 * 1024 * 1024:          # tightest scoped default (v5e)
        vmem_limit = min(int(vmem_needed * 1.5), 64 * 1024 * 1024)

    cost = pl.CostEstimate(
        flops=2 * B_pad * dim * cond_dim_pad,
        transcendentals=B_pad * cond_dim_pad,   # exp inside sigmoid
        bytes_accessed=(dim * cond_dim_pad + B_pad * dim) * w_bytes
                       + (B_pad * cond_dim_pad + cond_dim_pad) * 4,
    )

    out = pl.pallas_call(
        _mlp_silu_kernel,
        out_shape=jax.ShapeDtypeStruct((B_pad, cond_dim_pad), jnp.float32),
        grid_spec=pl.GridSpec(
            grid=(grid_n,),
            in_specs=[
                pl.BlockSpec((B_pad, dim), lambda n: (0, 0)),
                pl.BlockSpec((dim, tn), lambda n: (0, n)),
                pl.BlockSpec((1, tn), lambda n: (0, n)),
            ],
            out_specs=pl.BlockSpec((B_pad, tn), lambda n: (0, n)),
        ),
        compiler_params=pltpu.CompilerParams(
            # Independent N tiles -> shard across v7x's two TensorCores;
            # harmless no-op on single-TC v5e/v6e.  (No program_id(0)==0
            # scratch init exists in this kernel, so 'parallel' is safe.)
            dimension_semantics=("parallel",),
            vmem_limit_bytes=vmem_limit,
        ),
        cost_estimate=cost,
    )(emb, w, b2d)

    return out[:B, :cond_dim]


def _reference(timestep, weight_t, bias, dim):
    """Plain-JAX f32 reference mirroring the PyTorch module."""
    t = timestep.astype(jnp.float32).reshape(-1)
    omega = 1.0 / (10000.0 ** (jnp.arange(0, dim, 2, dtype=jnp.float32) / dim))
    ang = t[:, None] * omega[None, :]
    emb = jnp.concatenate([jnp.sin(ang), jnp.cos(ang)], axis=-1)
    z = jnp.dot(emb, weight_t, precision=jax.lax.Precision.HIGHEST) + bias
    return z * jax.nn.sigmoid(z)


def _make_inputs(key, dim, B):
    cond_dim = 4 * dim
    k_t, k_w, k_b = jax.random.split(key, 3)
    bound = 1.0 / (dim ** 0.5)
    weight = jax.random.uniform(k_w, (cond_dim, dim), jnp.float32,
                                minval=-bound, maxval=bound)  # PyTorch (out, in)
    bias = jax.random.uniform(k_b, (cond_dim,), jnp.float32,
                              minval=-bound, maxval=bound)
    timestep = jax.random.randint(k_t, (B,), 0, 1000).astype(jnp.float32)
    return timestep, weight.T, bias  # weight_t: (dim, cond_dim)


if __name__ == "__main__":
    key = jax.random.PRNGKey(0)
    k1, k2 = jax.random.split(key)

    # Config 1: f32 path, deliberately unaligned shapes (B=6, cond_dim=192)
    # to exercise the B->8 / cond_dim->256 padding and the 2-tile N grid.
    dim, B = 48, 6
    timestep, weight_t, bias = _make_inputs(k1, dim, B)
    out = jax.block_until_ready(
        conditioner_timestep(timestep, weight_t, bias, dim=dim))
    ref = _reference(timestep, weight_t, bias, dim)
    assert out.shape == (B, 4 * dim), out.shape
    assert jnp.allclose(out, ref, atol=1e-4, rtol=1e-4), (
        float(jnp.max(jnp.abs(out - ref))))

    # Config 2: bf16 weight/activation DMA (production path, halves HBM
    # traffic), f32 MXU accumulate + f32 SiLU epilogue; bf16-aware tolerance.
    dim, B = 64, 8
    timestep, weight_t, bias = _make_inputs(k2, dim, B)
    out = jax.block_until_ready(
        conditioner_timestep(timestep, weight_t, bias, dim=dim,
                             weight_dtype=jnp.bfloat16))
    ref = _reference(timestep, weight_t, bias, dim)
    assert out.shape == (B, 4 * dim), out.shape
    assert jnp.allclose(out, ref, atol=5e-2, rtol=5e-2), (
        float(jnp.max(jnp.abs(out - ref))))

    print("KERNEL_OK")
</pallas_src>

<mosaic_0001>
module attributes {stable_mosaic.version = 11 : i64} {
  func.func @_mlp_silu_kernel(%arg0: i32, %arg1: memref<8x48xf32, #tpu.memory_space<vmem>>, %arg2: memref<48x128xf32, #tpu.memory_space<vmem>>, %arg3: memref<1x128xf32, #tpu.memory_space<vmem>>, %arg4: memref<8x128xf32, #tpu.memory_space<vmem>>) attributes {dimension_semantics = [#tpu.dimension_semantics<parallel>], iteration_bounds = array<i64: 2>, scalar_prefetch = 0 : i64, scratch_operands = 0 : i64, tpu.core_type = #tpu.core_type<tc>, window_params = [{pipeline_mode = #tpu.pipeline_mode<synchronous>, transform_indices = @transform_0, window_bounds = array<i64: 8, 48>}, {transform_indices = @transform_1, window_bounds = array<i64: 48, 128>}, {transform_indices = @transform_2, window_bounds = array<i64: 1, 128>}, {transform_indices = @transform_3, window_bounds = array<i64: 8, 128>}]} {
    %c0 = arith.constant 0 : index
    %c0_0 = arith.constant 0 : index
    %0 = vector.load %arg1[%c0, %c0_0] : memref<8x48xf32, #tpu.memory_space<vmem>>, vector<8x48xf32>
    %c0_1 = arith.constant 0 : index
    %c0_2 = arith.constant 0 : index
    %1 = vector.load %arg2[%c0_1, %c0_2] : memref<48x128xf32, #tpu.memory_space<vmem>>, vector<48x128xf32>
    %cst = arith.constant dense<0.000000e+00> : vector<8x128xf32>
    %2 = tpu.matmul %0, %1, %cst {dimension_numbers = #tpu.dot_dimension_numbers<[1], [0], [0], [1], [0, 0, 1, 1], [], []>} : vector<8x48xf32>, vector<48x128xf32>, vector<8x128xf32> -> vector<8x128xf32>
    %c0_3 = arith.constant 0 : index
    %c0_4 = arith.constant 0 : index
    %3 = vector.load %arg3[%c0_3, %c0_4] : memref<1x128xf32, #tpu.memory_space<vmem>>, vector<1x128xf32>
    %4 = vector.broadcast %3 : vector<1x128xf32> to vector<8x128xf32>
    %5 = arith.addf %2, %4 : vector<8x128xf32>
    %6 = arith.negf %5 : vector<8x128xf32>
    %7 = math.exp %6 : vector<8x128xf32>
    %cst_5 = arith.constant 1.000000e+00 : f32
    %8 = vector.broadcast %cst_5 : f32 to vector<8x128xf32>
    %9 = arith.addf %8, %7 : vector<8x128xf32>
    %10 = arith.divf %8, %9 : vector<8x128xf32>
    %11 = arith.mulf %5, %10 : vector<8x128xf32>
    %c0_6 = arith.constant 0 : index
    %c0_7 = arith.constant 0 : index
    %12 = vector.load %arg4[%c0_6, %c0_7] : memref<8x128xf32, #tpu.memory_space<vmem>>, vector<8x128xf32>
    tpu.vector_store %arg4[%c0_6, %c0_7], %11 {strides = array<i32>} : memref<8x128xf32, #tpu.memory_space<vmem>>, vector<8x128xf32>,
    return
  }
  func.func @transform_0(%arg0: i32) -> (i32, i32) {
    %c0_i32 = arith.constant 0 : i32
    %c0_i32_0 = arith.constant 0 : i32
    %c0_i32_1 = arith.constant 0 : i32
    return %c0_i32, %c0_i32_0 : i32, i32
  }
  func.func @transform_1(%arg0: i32) -> (i32, i32) {
    %c0_i32 = arith.constant 0 : i32
    %c0_i32_0 = arith.constant 0 : i32
    return %c0_i32, %arg0 : i32, i32
  }
  func.func @transform_2(%arg0: i32) -> (i32, i32) {
    %c0_i32 = arith.constant 0 : i32
    %c0_i32_0 = arith.constant 0 : i32
    return %c0_i32, %arg0 : i32, i32
  }
  func.func @transform_3(%arg0: i32) -> (i32, i32) {
    %c0_i32 = arith.constant 0 : i32
    %c0_i32_0 = arith.constant 0 : i32
    return %c0_i32, %arg0 : i32, i32
  }
}

</mosaic_0001>

<llo_original>
// kernel: conditioner_timestep.1
$region0: #{conditioner_timestep.1}
  #allocation0 [shape = 'u32[]', space=smem, size = 0x4, offset = 0x4, fixed_abs, tag = 'smem constant byte address 0x4 - core index']
  #allocation1 [shape = 'u32[144,128]{1,0:T(1,128)}', space=vmem, size = 0x12000, scoped, tag = 'internal scratch']
  %s0 = inlined_call_operand.vmem [shape: f32[8,48], index: 0, kind: input, shape index: {}]
  %s1 = inlined_call_operand.vmem [shape: f32[48,256], index: 1, kind: input, shape index: {}]
  %s2 = inlined_call_operand.vmem [shape: f32[1,256], index: 2, kind: input, shape index: {}]
  %s3 = inlined_call_operand.hbm [shape: f32[8,256], index: 3, kind: output, shape index: {}]
  %s4 = sld [smem:[#allocation0]]
  $region83: #{conditioner_timestep.1} parent=0
    _
  %s6 = ssub.s32 1, %s4
  %s7 = scalar_select 0, %s6, %s4
  $region1: #{conditioner_timestep.1} parent=0
    #allocation2 [shape = 'u8[49152]{0}', space=vmem, size = 0xc000, scoped, tag = 'input window, operand 1']
    #allocation3 [shape = 'u8[8192]{0}', space=vmem, size = 0x2000, scoped, tag = 'output window, operand 0']
    #allocation4 [shape = 's32[2]{0}', space=sflag, size = 0x8, scoped, tag = 'scoped memory for conditioner_timestep.1']
    %8 = vsyncpa [#allocation4], 0
    %s9 = scalar_lea.sflag [#allocation4], 1
    %10 = vsyncpa %s9, 0
    loop: start=0, step=1, limit=4
    $region2: #{conditioner_timestep.1} parent=1 // loop_pre_header
      _
    $region3: #{conditioner_timestep.1} parent=1 // loop_header
      %s12 = sphi 0, %s16
      %p13 = scmp.ge.s32.totalorder %s12, 4
      %s20 = sphi 0, %s20
      %s22 = sphi 0, %s20
      %s23 = sphi 0, %s22
      %s37 = sphi 0, %s23
      %s43 = sphi 0, %s45
      %s46 = sphi 0, %s43
      %s47 = sphi 0, %s46
      %s63 = sphi 0, %s47
      %s69 = sphi 0, %s71
      %s72 = sphi 0, %s69
      %s73 = sphi 0, %s72
      %s89 = sphi 0, %s73
      %s95 = sphi 0, %s97
      %s98 = sphi 0, %s95
      %s99 = sphi 0, %s98
      %s115 = sphi 0, %s99
    $region4: #{conditioner_timestep.1} parent=1 // loop_header_branch
      %15 = sbr.rel (%p13) target = $region8
    $region5: #{conditioner_timestep.1} parent=1 // loop_body
      %s17 = ssub.s32 %s12, 1
      %s18 = ssub.s32 %s12, 2
      %s19 = sadd.s32 %s12, 1
      %s21 = sadd.s32 %s20, 1
      %p24 = scmp.eq.s32.totalorder %s12, 1
      %p25 = scmp.ne.s32.totalorder %s20, %s22
      %p26 = scmp.eq.s32.totalorder %s12, 0
      %p27 = por %p25, %p26
      %p28 = scmp.ne.s32.totalorder %s20, %s22
      %p29 = scmp.eq.s32.totalorder %s17, 1
      %p30 = por %p28, %p29
      %p31 = scmp.ne.s32.totalorder %s22, %s23
      %p32 = scmp.eq.s32.totalorder %s17, 0
      %p33 = por %p31, %p32
      %p34 = scmp.ne.s32.totalorder %s22, %s23
      %p35 = scmp.eq.s32.totalorder %s18, 1
      %p36 = por %p34, %p35
      %p38 = scmp.ne.s32.totalorder %s23, %s37
      %p39 = scmp.eq.s32.totalorder %s18, 0
      %p40 = por %p38, %p39
      %s41 = ssub.s32 %s12, %s19
      %p42 = scmp.eq.s32.totalorder %s41, 0
      %s44 = sadd.s32 %s43, 1
      %s45 = scalar_select %p42, %s43, %s44
      %p48 = pneg %p42
      %p49 = scmp.eq.s32.totalorder %s12, 1
      %p50 = por %p48, %p49
      %p51 = scmp.ne.s32.totalorder %s43, %s46
      %p52 = scmp.eq.s32.totalorder %s12, 0
      %p53 = por %p51, %p52
      %p54 = scmp.ne.s32.totalorder %s43, %s46
      %p55 = scmp.eq.s32.totalorder %s17, 1
      %p56 = por %p54, %p55
      %p57 = scmp.ne.s32.totalorder %s46, %s47
      %p58 = scmp.eq.s32.totalorder %s17, 0
      %p59 = por %p57, %p58
      %p60 = scmp.ne.s32.totalorder %s46, %s47
      %p61 = scmp.eq.s32.totalorder %s18, 1
      %p62 = por %p60, %p61
      %p64 = scmp.ne.s32.totalorder %s47, %s63
      %p65 = scmp.eq.s32.totalorder %s18, 0
      %p66 = por %p64, %p65
      %s67 = ssub.s32 %s12, %s19
      %p68 = scmp.eq.s32.totalorder %s67, 0
      %s70 = sadd.s32 %s69, 1
      %s71 = scalar_select %p68, %s69, %s70
      %p74 = pneg %p68
      %p75 = scmp.eq.s32.totalorder %s12, 1
      %p76 = por %p74, %p75
      %p77 = scmp.ne.s32.totalorder %s69, %s72
      %p78 = scmp.eq.s32.totalorder %s12, 0
      %p79 = por %p77, %p78
      %p80 = scmp.ne.s32.totalorder %s69, %s72
      %p81 = scmp.eq.s32.totalorder %s17, 1
      %p82 = por %p80, %p81
      %p83 = scmp.ne.s32.totalorder %s72, %s73
      %p84 = scmp.eq.s32.totalorder %s17, 0
      %p85 = por %p83, %p84
      %p86 = scmp.ne.s32.totalorder %s72, %s73
      %p87 = scmp.eq.s32.totalorder %s18, 1
      %p88 = por %p86, %p87
      %p90 = scmp.ne.s32.totalorder %s73, %s89
      %p91 = scmp.eq.s32.totalorder %s18, 0
      %p92 = por %p90, %p91
      %s93 = ssub.s32 %s12, %s19
      %p94 = scmp.eq.s32.totalorder %s93, 0
      %s96 = sadd.s32 %s95, 1
      %s97 = scalar_select %p94, %s95, %s96
      %p100 = pneg %p94
      %p101 = scmp.eq.s32.totalorder %s12, 1
      %p102 = por %p100, %p101
      %p103 = scmp.ne.s32.totalorder %s95, %s98
      %p104 = scmp.eq.s32.totalorder %s12, 0
      %p105 = por %p103, %p104
      %p106 = scmp.ne.s32.totalorder %s95, %s98
      %p107 = scmp.eq.s32.totalorder %s17, 1
      %p108 = por %p106, %p107
      %p109 = scmp.ne.s32.totalorder %s98, %s99
      %p110 = scmp.eq.s32.totalorder %s17, 0
      %p111 = por %p109, %p110
      %p112 = scmp.ne.s32.totalorder %s98, %s99
      %p113 = scmp.eq.s32.totalorder %s18, 1
      %p114 = por %p112, %p113
      %p116 = scmp.ne.s32.totalorder %s99, %s115
      %p117 = scmp.eq.s32.totalorder %s18, 0
      %p118 = por %p116, %p117
      %p119 = scmp.le.s32.totalorder 1, %s12
      %p120 = scmp.lt.s32.totalorder %s12, 3
      %p121 = pnand %p119, %p120
      %p122 = pneg %p121
      // Predicated region
      $region9: #{conditioner_timestep.1} parent=5 // pred_check
        _
      $region10: #{conditioner_timestep.1} parent=5 // pred_check_branch
        %124 = sbr.rel (%p121) target = $region12
      $region11: #{conditioner_timestep.1} parent=5 // pred_region
        %s125 = ssub.s32 %s12, 1
        // Predicated region
        $region13: #{conditioner_timestep.1} parent=11 // pred_check
          %p126 = pneg %p33
        $region14: #{conditioner_timestep.1} parent=11 // pred_check_branch
          %128 = sbr.rel (%p126) target = $region16
        $region15: #{conditioner_timestep.1} parent=11 // pred_region
          _
        $region16: #{conditioner_timestep.1} parent=11 // pred_fallthru
          _
      $region12: #{conditioner_timestep.1} parent=5 // pred_fallthru
        _
      %p129 = scmp.lt.s32.totalorder %s12, 2
      // Predicated region
      $region17: #{conditioner_timestep.1} parent=5 // pred_check
        %p130 = pneg %p129
      $region18: #{conditioner_timestep.1} parent=5 // pred_check_branch
        %132 = sbr.rel (%p130) target = $region20
      $region19: #{conditioner_timestep.1} parent=5 // pred_region
        // Predicated region
        $region21: #{conditioner_timestep.1} parent=19 // pred_check
          %p133 = pneg %p53
        $region22: #{conditioner_timestep.1} parent=19 // pred_check_branch
          %135 = sbr.rel (%p133) target = $region24
        $region23: #{conditioner_timestep.1} parent=19 // pred_region
          %s136 = sand.u32 %s43, 1
          %s137 = sand.u32 %s43, 1
          %s138 = smul.addr %s137, 48
          %s139 = scalar_lea.vmem [#allocation2], %s138
          %s140 = smul.addr %s12, 8
          %s141 = scalar_lea.vmem %s1, %s140
          // Predicated region
          $region25: #{conditioner_timestep.1} parent=23 // pred_check
            _
          $region26: #{conditioner_timestep.1} parent=23 // pred_check_branch
            %143 = sbr.rel (0) target = $region28
          $region27: #{conditioner_timestep.1} parent=23 // pred_region
            // Predicated region
            $region29: #{conditioner_timestep.1} parent=27 // pred_check
              _
            $region30: #{conditioner_timestep.1} parent=27 // pred_check_branch
              %145 = sbr.rel (0) target = $region32
            $region31: #{conditioner_timestep.1} parent=27 // pred_region
              // Predicated region
              $region44: #{conditioner_timestep.1} parent=31 // pred_check
                _
              $region45: #{conditioner_timestep.1} parent=31 // pred_check_branch
                %170 = sbr.rel (0) target = $region47
              $region46: #{conditioner_timestep.1} parent=31 // pred_region
                loop: start=0, step=1, limit=1
                $region48: #{conditioner_timestep.1} parent=46 // loop_pre_header
                  _
                $region49: #{conditioner_timestep.1} parent=46 // loop_header
                  %s172 = sphi 0, %s176
                  %p173 = scmp.ge.s32.totalorder %s172, 1
                  %s177 = sphi %s141, %s141
                  %s178 = sphi %s139, %s139
                $region50: #{conditioner_timestep.1} parent=46 // loop_header_branch
                  %175 = sbr.rel (%p173) target = $region54
                $region51: #{conditioner_timestep.1} parent=46 // loop_body
                  %v179 = vld [vmem:[%s177] sm:$0xff]
                  %180 = vst [vmem:[%s178] sm:$0xff] %v179
                  %v181 = vld [vmem:[%s177 + $0x10] sm:$0xff]
                  %182 = vst [vmem:[%s178 + $0x8] sm:$0xff] %v181
                  %v183 = vld [vmem:[%s177 + $0x20] sm:$0xff]
                  %184 = vst [vmem:[%s178 + $0x10] sm:$0xff] %v183
                  %v185 = vld [vmem:[%s177 + $0x30] sm:$0xff]
                  %186 = vst [vmem:[%s178 + $0x18] sm:$0xff] %v185
                  %v187 = vld [vmem:[%s177 + $0x40] sm:$0xff]
                  %188 = vst [vmem:[%s178 + $0x20] sm:$0xff] %v187
                  %v189 = vld [vmem:[%s177 + $0x50] sm:$0xff]
                  %190 = vst [vmem:[%s178 + $0x28] sm:$0xff] %v189
                $region52: #{conditioner_timestep.1} parent=46 // loop_footer
                  %s176 = sadd.s32 1, %s172
                $region53: #{conditioner_timestep.1} parent=46 // loop_footer_branch
                  %171 = sbr.rel target = $region49
                $region54: #{conditioner_timestep.1} parent=46 // loop_exit
                  _
              $region47: #{conditioner_timestep.1} parent=31 // pred_fallthru
                _
              // Predicated region
              $region55: #{conditioner_timestep.1} parent=31 // pred_check
                _
              $region56: #{conditioner_timestep.1} parent=31 // pred_check_branch
                %192 = sbr.rel target = $region58
              $region57: #{conditioner_timestep.1} parent=31 // pred_region
                _
              $region58: #{conditioner_timestep.1} parent=31 // pred_fallthru
                _
            $region32: #{conditioner_timestep.1} parent=27 // pred_fallthru
              _
            // Predicated region
            $region33: #{conditioner_timestep.1} parent=27 // pred_check
              _
            $region34: #{conditioner_timestep.1} parent=27 // pred_check_branch
              %147 = sbr.rel target = $region36
            $region35: #{conditioner_timestep.1} parent=27 // pred_region
              loop: start=0, step=1, limit=1
              $region37: #{conditioner_timestep.1} parent=35 // loop_pre_header
                _
              $region38: #{conditioner_timestep.1} parent=35 // loop_header
                %s150 = sphi 0, %s154
                %p151 = scmp.ge.s32.totalorder %s150, 1
                %s155 = sphi %s141, %s141
                %s156 = sphi %s139, %s139
              $region39: #{conditioner_timestep.1} parent=35 // loop_header_branch
                %153 = sbr.rel (%p151) target = $region43
              $region40: #{conditioner_timestep.1} parent=35 // loop_body
                %v157 = vld [vmem:[%s155] sm:$0xff]
                %158 = vst [vmem:[%s156] sm:$0xff] %v157
                %v159 = vld [vmem:[%s155 + $0x10] sm:$0xff]
                %160 = vst [vmem:[%s156 + $0x8] sm:$0xff] %v159
                %v161 = vld [vmem:[%s155 + $0x20] sm:$0xff]
                %162 = vst [vmem:[%s156 + $0x10] sm:$0xff] %v161
                %v163 = vld [vmem:[%s155 + $0x30] sm:$0xff]
                %164 = vst [vmem:[%s156 + $0x18] sm:$0xff] %v163
                %v165 = vld [vmem:[%s155 + $0x40] sm:$0xff]
                %166 = vst [vmem:[%s156 + $0x20] sm:$0xff] %v165
                %v167 = vld [vmem:[%s155 + $0x50] sm:$0xff]
                %168 = vst [vmem:[%s156 + $0x28] sm:$0xff] %v167
              $region41: #{conditioner_timestep.1} parent=35 // loop_footer
                %s154 = sadd.s32 1, %s150
              $region42: #{conditioner_timestep.1} parent=35 // loop_footer_branch
                %149 = sbr.rel target = $region38
              $region43: #{conditioner_timestep.1} parent=35 // loop_exit
                _
            $region36: #{conditioner_timestep.1} parent=27 // pred_fallthru
              _
          $region28: #{conditioner_timestep.1} parent=23 // pred_fallthru
            _
          %193 = vnop
        $region24: #{conditioner_timestep.1} parent=19 // pred_fallthru
          _
        // Predicated region
        $region59: #{conditioner_timestep.1} parent=19 // pred_check
          %p194 = pneg %p79
        $region60: #{conditioner_timestep.1} parent=19 // pred_check_branch
          %196 = sbr.rel (%p194) target = $region62
        $region61: #{conditioner_timestep.1} parent=19 // pred_region
          %p197 = scmp.lt.s32.totalorder %s12, 1
          %s198 = scalar_select %p197, %s12, 1
          %s199 = scalar_lea.vmem %s2, %s198
        $region62: #{conditioner_timestep.1} parent=19 // pred_fallthru
          _
      $region20: #{conditioner_timestep.1} parent=5 // pred_fallthru
        _
      %p200 = scmp.le.s32.totalorder 1, %s12
      %p201 = scmp.lt.s32.totalorder %s12, 3
      %p202 = pnand %p200, %p201
      %p203 = pneg %p202
      // Predicated region
      $region63: #{conditioner_timestep.1} parent=5 // pred_check
        _
      $region64: #{conditioner_timestep.1} parent=5 // pred_check_branch
        %205 = sbr.rel (%p202) target = $region66
      $region65: #{conditioner_timestep.1} parent=5 // pred_region
        %s206 = ssub.s32 %s12, 1
        %s207 = sand.u32 %s46, 1
        %s208 = sand.u32 %s46, 1
        %s209 = smul.addr %s208, 48
        %s210 = scalar_lea.vmem [#allocation2], %s209
        // Predicated region
        $region67: #{conditioner_timestep.1} parent=65 // pred_check
          %p211 = pneg %p59
        $region68: #{conditioner_timestep.1} parent=65 // pred_check_branch
          %213 = sbr.rel (%p211) target = $region70
        $region69: #{conditioner_timestep.1} parent=65 // pred_region
          _
        $region70: #{conditioner_timestep.1} parent=65 // pred_fallthru
          _
        %p214 = pneg %p33
        %p215 = pneg %p30
        %s216 = sand.u32 %s46, 1
        %s217 = sand.u32 %s46, 1
        %s218 = smul.addr %s217, 48
        %s219 = scalar_lea.vmem [#allocation2], %s218
        %p220 = pneg %p59
        %p221 = pneg %p56
        %p222 = scmp.lt.s32.totalorder %s17, 1
        %s223 = scalar_select %p222, %s17, 1
        %s224 = scalar_lea.vmem %s2, %s223
        %p225 = pneg %p85
        %p226 = pneg %p82
        %p227 = pneg %p111
        %p228 = pneg %p108
        %s229 = sand.u32 %s98, 1
        %s230 = scalar_lea.sflag [#allocation4], %s229
        %s231 = sand.u32 %s98, 1
        %s232 = smul.addr %s231, 8
        %s233 = scalar_lea.vmem [#allocation3], %s232
        %p234 = scmp.lt.s32.totalorder %s17, 1
        %s235 = scalar_select %p234, %s17, 1
        %s236 = scalar_lea.vmem %s2, %s235
        %v237 = vld [vmem:[%s0] sm:$0xff]
        %v238 = vld [vmem:[%s210] sm:$0xff]
        %v239 = vld [vmem:[%s210 + $0x8] sm:$0xff]
        %v240 = vld [vmem:[%s210 + $0x10] sm:$0xff]
        %v241 = vld [vmem:[%s210 + $0x18] sm:$0xff]
        %v242 = vld [vmem:[%s210 + $0x20] sm:$0xff]
        %v243 = vld [vmem:[%s210 + $0x28] sm:$0xff]
        %v244 = vld [vmem:[%s236] sm:$0x1]
        %v246 = vlaneseq
        %v247 = vshrl.u32 %v246, 7
        %v248 = vsub.s32 0, %v247
        %v249 = vrot.slane %v244, %v248
        %vm251 = vcmask 392192
        %v253 = vsel %vm251, %v237, 0
        %255 = vmatprep.subr.mxu0 0.0
        %256 = vmatpush1.msra.mxu0 %v238
        %257 = vmatprep.subr.mxu0 0.0
        %258 = vmatpush1.msra.mxu0 %v239
        %259 = vmatprep.subr.mxu0 0.0
        %260 = vmatpush1.msra.mxu0 %v240
        %261 = vmatprep.subr.mxu0 0.0
        %262 = vmatpush1.msra.mxu0 %v241
        %263 = vmatprep.subr.mxu0 0.0
        %264 = vmatpush1.msra.mxu0 %v242
        %265 = vmatprep.subr.mxu0 0.0
        %266 = vmatpush1.msra.mxu0 %v243
        %267 = vmatprep.subr.mxu0 0.0
        %268 = vmatpush1.msra.mxu0 0.0
        %269 = vmatprep.subr.mxu0 0.0
        %270 = vmatpush1.msra.mxu0 0.0
        %271 = vmatprep.subr.mxu0 0.0
        %272 = vmatpush1.msra.mxu0 0.0
        %273 = vmatprep.subr.mxu0 0.0
        %274 = vmatpush1.msra.mxu0 0.0
        %275 = vmatprep.subr.mxu0 0.0
        %276 = vmatpush1.msra.mxu0 0.0
        %277 = vmatprep.subr.mxu0 0.0
        %278 = vmatpush1.msra.mxu0 0.0
        %279 = vmatprep.subr.mxu0 0.0
        %280 = vmatpush1.msra.mxu0 0.0
        %281 = vmatprep.subr.mxu0 0.0
        %282 = vmatpush1.msra.mxu0 0.0
        %283 = vmatprep.subr.mxu0 0.0
        %284 = vmatpush1.msra.mxu0 0.0
        %285 = vmatprep.subr.mxu0 0.0
        %286 = vmatpush1.msra.mxu0 0.0
        %287 = vmatprep.subr.mxu0 0.0
        %288 = vmatpush1.msra.mxu0 0.0
        %289 = vmatprep.subr.mxu0 0.0
        %290 = vmatpush1.msra.mxu0 0.0
        %291 = vmatprep.subr.mxu0 0.0
        %292 = vmatpush1.msra.mxu0 0.0
        %293 = vmatprep.subr.mxu0 0.0
        %294 = vmatpush1.msra.mxu0 0.0
        %295 = vmatprep.subr.mxu0 0.0
        %296 = vmatpush1.msra.mxu0 0.0
        %297 = vmatprep.subr.mxu0 0.0
        %298 = vmatpush1.msra.mxu0 0.0
        %299 = vmatprep.subr.mxu0 0.0
        %300 = vmatpush1.msra.mxu0 0.0
        %301 = vmatprep.subr.mxu0 0.0
        %302 = vmatpush1.msra.mxu0 0.0
        %303 = vmatprep.subr.mxu0 0.0
        %304 = vmatpush1.msra.mxu0 0.0
        %305 = vmatprep.subr.mxu0 0.0
        %306 = vmatpush1.msra.mxu0 0.0
        %307 = vmatprep.subr.mxu0 0.0
        %308 = vmatpush1.msra.mxu0 0.0
        %309 = vmatprep.subr.mxu0 0.0
        %310 = vmatpush1.msra.mxu0 0.0
        %311 = vmatprep.subr.mxu0 0.0
        %312 = vmatpush1.msra.mxu0 0.0
        %313 = vmatprep.subr.mxu0 0.0
        %314 = vmatpush1.msra.mxu0 0.0
        %315 = vmatprep.subr.mxu0 0.0
        %316 = vmatpush1.msra.mxu0 0.0
        %317 = vmatprep.subr.mxu0 0.0
        %318 = vmatpush1.msra.mxu0 0.0
        %319 = vmatprep.mubr.f32.mxu0 0.0
        %320 = vmatmul.mubr.f32.gmra.mrb[0].mxu0 %v253
        %v321 = vpop.f32.mrb[0].mxu0
        %v322 = vadd.f32 %v249, %v321
        %v323 = vpop.f32.mrb[0].mxu0
        %324 = vdwg.mxu0
        %v325 = vxor.u32 %v322, 2147483648
        %v326 = vmul.f32 %v325, 1.442695
        %v327 = vpow.pop %v326
        %v328 = vadd.f32 %v327, 1.0
        %v329 = vrcp.pop %v328
        %v330 = vmul.f32 1.0, %v329
        %v331 = vmul.f32 %v322, %v330
        %332 = vst [vmem:[%s233] sm:$0xff] %v331
        %s333 = sand.u32 %s98, 1
        %s334 = scalar_lea.sflag [#allocation4], %s333
        %s335 = sand.u32 %s98, 1
        %s336 = smul.addr %s335, 8
        %s337 = scalar_lea.vmem [#allocation3], %s336
        // Predicated region
        $region71: #{conditioner_timestep.1} parent=65 // pred_check
          %p338 = pneg %p108
        $region72: #{conditioner_timestep.1} parent=65 // pred_check_branch
          %340 = sbr.rel (%p338) target = $region74
        $region73: #{conditioner_timestep.1} parent=65 // pred_region
          %s342 = ssub.s32 128, 128
          %343 = vsyncadd %s334, %s342
          %s344 = smul.addr %s17, 128
          %s345 = scalar_lea.hbm %s3, %s344
          %s347 = sshll.u32 %s337, 4
          %s348 = int_to_ptr.vmem [resolvable:$true] %s347
          %350 = dma.vmem_to_hbm [thread:$0]  %s348, 128, %s345, %s334
        $region74: #{conditioner_timestep.1} parent=65 // pred_fallthru
          _
      $region66: #{conditioner_timestep.1} parent=5 // pred_fallthru
        _
      %p351 = scmp.le.s32.totalorder 2, %s12
      // Predicated region
      $region75: #{conditioner_timestep.1} parent=5 // pred_check
        %p352 = pneg %p351
      $region76: #{conditioner_timestep.1} parent=5 // pred_check_branch
        %354 = sbr.rel (%p352) target = $region78
      $region77: #{conditioner_timestep.1} parent=5 // pred_region
        %s355 = ssub.s32 %s12, 2
        // Predicated region
        $region79: #{conditioner_timestep.1} parent=77 // pred_check
          %p356 = pneg %p114
        $region80: #{conditioner_timestep.1} parent=77 // pred_check_branch
          %358 = sbr.rel (%p356) target = $region82
        $region81: #{conditioner_timestep.1} parent=77 // pred_region
          %s359 = sand.u32 %s99, 1
          %s360 = scalar_lea.sflag [#allocation4], %s359
          %s361 = sand.u32 %s99, 1
          %s362 = smul.addr %s361, 8
          %s363 = scalar_lea.vmem [#allocation3], %s362
          %364 = dma.done %s360, 128
        $region82: #{conditioner_timestep.1} parent=77 // pred_fallthru
          _
      $region78: #{conditioner_timestep.1} parent=5 // pred_fallthru
        _
    $region6: #{conditioner_timestep.1} parent=1 // loop_footer
      %s16 = sadd.s32 1, %s12
    $region7: #{conditioner_timestep.1} parent=1 // loop_footer_branch
      %11 = sbr.rel target = $region3
    $region8: #{conditioner_timestep.1} parent=1 // loop_exit
      _
    %365 = vsyncpa [#allocation4], 1
    %s366 = scalar_lea.sflag [#allocation4], 1
    %367 = vsyncpa %s366, 1

</llo_original>
